<compile_context>
chip_gen: v7x
topology: tpu7x:2x2x1
jax: 0.10.0
libtpu: 0.0.40
codegen_flags: <defaults>
</compile_context>

<pallas_src>
import functools

import jax
import jax.numpy as jnp
from jax import lax
from jax.experimental import pallas as pl
from jax.experimental.pallas import tpu as pltpu


def _fscore_kernel(pred_ref, y_ref, f1_ref, tp_ref, pc_ref, tc_ref, *, n_total):
    # pred_ref, y_ref : (C, TILE_N) blocks (class axis on sublanes, batch on lanes)
    # f1_ref          : (C, 1) per-class F1 output (written once, on the last step)
    # tp/pc/tc_ref    : (C, 1) f32 VMEM accumulators (TP, TP+FP, TP+FN)
    pid = pl.program_id(0)

    @pl.when(pid == 0)
    def _init():
        tp_ref[...] = jnp.zeros_like(tp_ref)
        pc_ref[...] = jnp.zeros_like(pc_ref)
        tc_ref[...] = jnp.zeros_like(tc_ref)

    pred = pred_ref[...].astype(jnp.float32)   # (C, T)
    y = y_ref[...].astype(jnp.float32)         # (C, T)
    C, T = pred.shape

    cls_idx = lax.broadcasted_iota(jnp.int32, (C, T), 0)

    def argmax_onehot(x):
        # first-max argmax over the class (sublane) axis, as a one-hot (C, T) matrix
        mx = jnp.max(x, axis=0, keepdims=True)
        is_max = x == mx
        first = jnp.min(jnp.where(is_max, cls_idx, C), axis=0, keepdims=True)
        return (cls_idx == first).astype(jnp.float32)

    p_onehot = argmax_onehot(pred)   # predicted class (== argmax of softmax)
    y_onehot = argmax_onehot(y)      # true class (spec argmaxes y)

    # Mask out padded samples in the final partial tile (static no-op when N % T == 0).
    if n_total % T != 0:
        lane = lax.broadcasted_iota(jnp.int32, (C, T), 1)
        valid = ((pid * T + lane) < n_total).astype(jnp.float32)
        p_onehot = p_onehot * valid
        y_onehot = y_onehot * valid

    tp_ref[...] += jnp.sum(p_onehot * y_onehot, axis=1, keepdims=True)  # TP
    pc_ref[...] += jnp.sum(p_onehot, axis=1, keepdims=True)             # TP + FP
    tc_ref[...] += jnp.sum(y_onehot, axis=1, keepdims=True)             # TP + FN

    @pl.when(pid == pl.num_programs(0) - 1)
    def _finalize():
        tp = tp_ref[...]
        denom = pc_ref[...] + tc_ref[...]      # 2TP + FP + FN
        f1_ref[...] = jnp.where(denom > 0.0,
                                2.0 * tp / jnp.maximum(denom, 1.0),
                                0.0)


def fscore_per_class(prediction, y, *, tile_n=32768):
    """Per-class multiclass F1 of argmax(prediction, axis=1) vs argmax(y, axis=1).

    prediction, y : [N, C] arrays (any float/int dtype; cast in-kernel).
    Returns (C,) float32 per-class F1.
    """
    N, C = prediction.shape
    # Layout plumbing: present lane-dense [C, N] slabs to the kernel.
    pred_t = jnp.transpose(prediction)
    y_t = jnp.transpose(y)

    # tile_n must be a multiple of 128; a single full-width block is used when N fits.
    tile = N if N <= tile_n else tile_n
    grid_n = pl.cdiv(N, tile)

    out = pl.pallas_call(
        functools.partial(_fscore_kernel, n_total=N),
        out_shape=jax.ShapeDtypeStruct((C, 1), jnp.float32),
        grid_spec=pltpu.PrefetchScalarGridSpec(
            num_scalar_prefetch=0,
            grid=(grid_n,),
            in_specs=[
                pl.BlockSpec((C, tile), lambda i: (0, i)),
                pl.BlockSpec((C, tile), lambda i: (0, i)),
            ],
            out_specs=pl.BlockSpec((C, 1), lambda i: (0, 0)),
            scratch_shapes=[pltpu.VMEM((C, 1), jnp.float32)] * 3,
        ),
        compiler_params=pltpu.CompilerParams(
            dimension_semantics=("arbitrary",)),   # accumulating (reduction) axis
    )(pred_t, y_t)
    return out[:, 0]


class FscorePallas:
    """Mirror of the PyTorch Fscore module (returns a python float scalar)."""

    _NAME_DICT = {0: 'normal', 1: 'gist', 2: 'leiomyoma', 3: 'schwannoma'}

    def __init__(self, classes, targets):
        self.classes = classes
        self.targets = targets
        self._name = f'f_{self._NAME_DICT[targets]}'

    @property
    def __name__(self):
        return self._name

    def __call__(self, prediction, y):
        f1 = fscore_per_class(prediction, y)      # (C,)
        # f1[targets].float().mean().item() -> scalar
        # NOTE: float(...) forces a host sync (same as .item()); keep on-device
        # and batch readbacks if this sits in a training loop.
        return float(jnp.mean(f1[self.targets]))


def _reference_f1(prediction, y, C):
    p_arg = jnp.argmax(prediction, axis=1)   # argmax(softmax(x)) == argmax(x)
    y_arg = jnp.argmax(y, axis=1)
    ref = []
    for c in range(C):
        tp = jnp.sum((p_arg == c) & (y_arg == c)).astype(jnp.float32)
        fp = jnp.sum((p_arg == c) & (y_arg != c)).astype(jnp.float32)
        fn = jnp.sum((p_arg != c) & (y_arg == c)).astype(jnp.float32)
        d = 2 * tp + fp + fn
        ref.append(jnp.where(d > 0, 2 * tp / d, 0.0))
    return jnp.stack(ref)


if __name__ == "__main__":
    key = jax.random.PRNGKey(0)
    k1, k2, k3, k4 = jax.random.split(key, 4)

    # --- small test (single full-width block) ---
    N, C = 8, 4                      # batch=8, classes=4 (normal/gist/leiomyoma/schwannoma)
    prediction = jax.random.normal(k1, (N, C), dtype=jnp.float32)   # logits
    labels = jax.random.randint(k2, (N,), 0, C)
    y = jax.nn.one_hot(labels, C, dtype=jnp.float32)                # one-hot targets

    metric = FscorePallas(classes=C, targets=1)       # 'f_gist'

    f1_all = fscore_per_class(prediction, y)
    jax.block_until_ready(f1_all)
    val = metric(prediction, y)

    ref = _reference_f1(prediction, y, C)
    assert jnp.allclose(f1_all, ref, atol=1e-6), (f1_all, ref)
    assert abs(val - float(ref[1])) < 1e-6

    # --- tiled + partial-last-tile test (grid over N, masking path) ---
    N2 = 300
    prediction2 = jax.random.normal(k3, (N2, C), dtype=jnp.float32)
    labels2 = jax.random.randint(k4, (N2,), 0, C)
    y2 = jax.nn.one_hot(labels2, C, dtype=jnp.float32)

    f1_tiled = fscore_per_class(prediction2, y2, tile_n=128)   # 3 grid steps, last partial
    jax.block_until_ready(f1_tiled)
    ref2 = _reference_f1(prediction2, y2, C)
    assert jnp.allclose(f1_tiled, ref2, atol=1e-6), (f1_tiled, ref2)

    print("KERNEL_OK")
</pallas_src>

<mosaic_0001>
module attributes {stable_mosaic.version = 11 : i64} {
  func.func @_fscore_kernel(%arg0: i32, %arg1: memref<4x8xf32, #tpu.memory_space<vmem>>, %arg2: memref<4x8xf32, #tpu.memory_space<vmem>>, %arg3: memref<4x1xf32, #tpu.memory_space<vmem>>, %arg4: memref<4x1xf32, #tpu.memory_space<vmem>>, %arg5: memref<4x1xf32, #tpu.memory_space<vmem>>, %arg6: memref<4x1xf32, #tpu.memory_space<vmem>>) attributes {dimension_semantics = [#tpu.dimension_semantics<arbitrary>], iteration_bounds = array<i64: 1>, scalar_prefetch = 0 : i64, scratch_operands = 3 : i64, tpu.core_type = #tpu.core_type<tc>, window_params = [{transform_indices = @transform_0, window_bounds = array<i64: 4, 8>}, {transform_indices = @transform_1, window_bounds = array<i64: 4, 8>}, {pipeline_mode = #tpu.pipeline_mode<synchronous>, transform_indices = @transform_2, window_bounds = array<i64: 4, 1>}]} {
    %c0_i32 = arith.constant 0 : i32
    %0 = arith.cmpi eq, %arg0, %c0_i32 : i32
    %1 = arith.extui %0 : i1 to i32
    %c0_i32_0 = arith.constant 0 : i32
    %2 = arith.cmpi ne, %1, %c0_i32_0 : i32
    scf.if %2 {
      %cst_25 = arith.constant 0.000000e+00 : f32
      %49 = vector.broadcast %cst_25 : f32 to vector<4x1xf32>
      %c0_26 = arith.constant 0 : index
      %c0_27 = arith.constant 0 : index
      %50 = vector.load %arg4[%c0_26, %c0_27] : memref<4x1xf32, #tpu.memory_space<vmem>>, vector<4x1xf32>
      tpu.vector_store %arg4[%c0_26, %c0_27], %49 {strides = array<i32>} : memref<4x1xf32, #tpu.memory_space<vmem>>, vector<4x1xf32>,
      %cst_28 = arith.constant 0.000000e+00 : f32
      %51 = vector.broadcast %cst_28 : f32 to vector<4x1xf32>
      %c0_29 = arith.constant 0 : index
      %c0_30 = arith.constant 0 : index
      %52 = vector.load %arg5[%c0_29, %c0_30] : memref<4x1xf32, #tpu.memory_space<vmem>>, vector<4x1xf32>
      tpu.vector_store %arg5[%c0_29, %c0_30], %51 {strides = array<i32>} : memref<4x1xf32, #tpu.memory_space<vmem>>, vector<4x1xf32>,
      %cst_31 = arith.constant 0.000000e+00 : f32
      %53 = vector.broadcast %cst_31 : f32 to vector<4x1xf32>
      %c0_32 = arith.constant 0 : index
      %c0_33 = arith.constant 0 : index
      %54 = vector.load %arg6[%c0_32, %c0_33] : memref<4x1xf32, #tpu.memory_space<vmem>>, vector<4x1xf32>
      tpu.vector_store %arg6[%c0_32, %c0_33], %53 {strides = array<i32>} : memref<4x1xf32, #tpu.memory_space<vmem>>, vector<4x1xf32>,
    } else {
    }
    %c0 = arith.constant 0 : index
    %c0_1 = arith.constant 0 : index
    %3 = vector.load %arg1[%c0, %c0_1] : memref<4x8xf32, #tpu.memory_space<vmem>>, vector<4x8xf32>
    %c0_2 = arith.constant 0 : index
    %c0_3 = arith.constant 0 : index
    %4 = vector.load %arg2[%c0_2, %c0_3] : memref<4x8xf32, #tpu.memory_space<vmem>>, vector<4x8xf32>
    %5 = tpu.iota {dimensions = array<i32: 0>} : vector<4x8xi32>
    %cst = arith.constant dense<0xFF800000> : vector<8xf32>
    %6 = vector.multi_reduction <maximumf>, %3, %cst [0] : vector<4x8xf32> to vector<8xf32>
    %7 = vector.shape_cast %6 : vector<8xf32> to vector<1x8xf32>
    %8 = vector.broadcast %7 : vector<1x8xf32> to vector<4x8xf32>
    %9 = arith.cmpf oeq, %3, %8 : vector<4x8xf32>
    %c4_i32 = arith.constant 4 : i32
    %10 = vector.broadcast %c4_i32 : i32 to vector<4x8xi32>
    %11 = arith.select %9, %5, %10 : vector<4x8xi1>, vector<4x8xi32>
    %cst_4 = arith.constant dense<2147483647> : vector<8xi32>
    %12 = vector.multi_reduction <minsi>, %11, %cst_4 [0] : vector<4x8xi32> to vector<8xi32>
    %13 = vector.shape_cast %12 : vector<8xi32> to vector<1x8xi32>
    %14 = vector.broadcast %13 : vector<1x8xi32> to vector<4x8xi32>
    %15 = arith.cmpi eq, %5, %14 : vector<4x8xi32>
    %16 = arith.extui %15 : vector<4x8xi1> to vector<4x8xi32>
    %17 = arith.sitofp %16 : vector<4x8xi32> to vector<4x8xf32>
    %cst_5 = arith.constant dense<0xFF800000> : vector<8xf32>
    %18 = vector.multi_reduction <maximumf>, %4, %cst_5 [0] : vector<4x8xf32> to vector<8xf32>
    %19 = vector.shape_cast %18 : vector<8xf32> to vector<1x8xf32>
    %20 = vector.broadcast %19 : vector<1x8xf32> to vector<4x8xf32>
    %21 = arith.cmpf oeq, %4, %20 : vector<4x8xf32>
    %c4_i32_6 = arith.constant 4 : i32
    %22 = vector.broadcast %c4_i32_6 : i32 to vector<4x8xi32>
    %23 = arith.select %21, %5, %22 : vector<4x8xi1>, vector<4x8xi32>
    %cst_7 = arith.constant dense<2147483647> : vector<8xi32>
    %24 = vector.multi_reduction <minsi>, %23, %cst_7 [0] : vector<4x8xi32> to vector<8xi32>
    %25 = vector.shape_cast %24 : vector<8xi32> to vector<1x8xi32>
    %26 = vector.broadcast %25 : vector<1x8xi32> to vector<4x8xi32>
    %27 = arith.cmpi eq, %5, %26 : vector<4x8xi32>
    %28 = arith.extui %27 : vector<4x8xi1> to vector<4x8xi32>
    %29 = arith.sitofp %28 : vector<4x8xi32> to vector<4x8xf32>
    %c0_8 = arith.constant 0 : index
    %c0_9 = arith.constant 0 : index
    %30 = vector.load %arg4[%c0_8, %c0_9] : memref<4x1xf32, #tpu.memory_space<vmem>>, vector<4x1xf32>
    %31 = arith.mulf %17, %29 : vector<4x8xf32>
    %cst_10 = arith.constant dense<0.000000e+00> : vector<4xf32>
    %32 = vector.multi_reduction <add>, %31, %cst_10 [1] : vector<4x8xf32> to vector<4xf32>
    %33 = vector.shape_cast %32 : vector<4xf32> to vector<4x1xf32>
    %34 = arith.addf %30, %33 : vector<4x1xf32>
    %c0_11 = arith.constant 0 : index
    %c0_12 = arith.constant 0 : index
    %35 = vector.load %arg4[%c0_11, %c0_12] : memref<4x1xf32, #tpu.memory_space<vmem>>, vector<4x1xf32>
    tpu.vector_store %arg4[%c0_11, %c0_12], %34 {strides = array<i32>} : memref<4x1xf32, #tpu.memory_space<vmem>>, vector<4x1xf32>,
    %c0_13 = arith.constant 0 : index
    %c0_14 = arith.constant 0 : index
    %36 = vector.load %arg5[%c0_13, %c0_14] : memref<4x1xf32, #tpu.memory_space<vmem>>, vector<4x1xf32>
    %cst_15 = arith.constant dense<0.000000e+00> : vector<4xf32>
    %37 = vector.multi_reduction <add>, %17, %cst_15 [1] : vector<4x8xf32> to vector<4xf32>
    %38 = vector.shape_cast %37 : vector<4xf32> to vector<4x1xf32>
    %39 = arith.addf %36, %38 : vector<4x1xf32>
    %c0_16 = arith.constant 0 : index
    %c0_17 = arith.constant 0 : index
    %40 = vector.load %arg5[%c0_16, %c0_17] : memref<4x1xf32, #tpu.memory_space<vmem>>, vector<4x1xf32>
    tpu.vector_store %arg5[%c0_16, %c0_17], %39 {strides = array<i32>} : memref<4x1xf32, #tpu.memory_space<vmem>>, vector<4x1xf32>,
    %c0_18 = arith.constant 0 : index
    %c0_19 = arith.constant 0 : index
    %41 = vector.load %arg6[%c0_18, %c0_19] : memref<4x1xf32, #tpu.memory_space<vmem>>, vector<4x1xf32>
    %cst_20 = arith.constant dense<0.000000e+00> : vector<4xf32>
    %42 = vector.multi_reduction <add>, %29, %cst_20 [1] : vector<4x8xf32> to vector<4xf32>
    %43 = vector.shape_cast %42 : vector<4xf32> to vector<4x1xf32>
    %44 = arith.addf %41, %43 : vector<4x1xf32>
    %c0_21 = arith.constant 0 : index
    %c0_22 = arith.constant 0 : index
    %45 = vector.load %arg6[%c0_21, %c0_22] : memref<4x1xf32, #tpu.memory_space<vmem>>, vector<4x1xf32>
    tpu.vector_store %arg6[%c0_21, %c0_22], %44 {strides = array<i32>} : memref<4x1xf32, #tpu.memory_space<vmem>>, vector<4x1xf32>,
    %c0_i32_23 = arith.constant 0 : i32
    %46 = arith.cmpi eq, %arg0, %c0_i32_23 : i32
    %47 = arith.extui %46 : i1 to i32
    %c0_i32_24 = arith.constant 0 : i32
    %48 = arith.cmpi ne, %47, %c0_i32_24 : i32
    scf.if %48 {
      %c0_25 = arith.constant 0 : index
      %c0_26 = arith.constant 0 : index
      %49 = vector.load %arg4[%c0_25, %c0_26] : memref<4x1xf32, #tpu.memory_space<vmem>>, vector<4x1xf32>
      %c0_27 = arith.constant 0 : index
      %c0_28 = arith.constant 0 : index
      %50 = vector.load %arg5[%c0_27, %c0_28] : memref<4x1xf32, #tpu.memory_space<vmem>>, vector<4x1xf32>
      %c0_29 = arith.constant 0 : index
      %c0_30 = arith.constant 0 : index
      %51 = vector.load %arg6[%c0_29, %c0_30] : memref<4x1xf32, #tpu.memory_space<vmem>>, vector<4x1xf32>
      %52 = arith.addf %50, %51 : vector<4x1xf32>
      %cst_31 = arith.constant 0.000000e+00 : f32
      %53 = vector.broadcast %cst_31 : f32 to vector<4x1xf32>
      %54 = arith.cmpf ogt, %52, %53 : vector<4x1xf32>
      %cst_32 = arith.constant 2.000000e+00 : f32
      %55 = vector.broadcast %cst_32 : f32 to vector<4x1xf32>
      %56 = arith.mulf %55, %49 : vector<4x1xf32>
      %cst_33 = arith.constant 1.000000e+00 : f32
      %57 = vector.broadcast %cst_33 : f32 to vector<4x1xf32>
      %58 = arith.maximumf %52, %57 : vector<4x1xf32>
      %59 = arith.divf %56, %58 : vector<4x1xf32>
      %cst_34 = arith.constant 0.000000e+00 : f32
      %60 = vector.broadcast %cst_34 : f32 to vector<4x1xf32>
      %61 = arith.select %54, %59, %60 : vector<4x1xi1>, vector<4x1xf32>
      %c0_35 = arith.constant 0 : index
      %c0_36 = arith.constant 0 : index
      %62 = vector.load %arg3[%c0_35, %c0_36] : memref<4x1xf32, #tpu.memory_space<vmem>>, vector<4x1xf32>
      tpu.vector_store %arg3[%c0_35, %c0_36], %61 {strides = array<i32>} : memref<4x1xf32, #tpu.memory_space<vmem>>, vector<4x1xf32>,
    } else {
    }
    return
  }
  func.func @transform_0(%arg0: i32) -> (i32, i32) {
    %c0_i32 = arith.constant 0 : i32
    %c0_i32_0 = arith.constant 0 : i32
    return %c0_i32, %arg0 : i32, i32
  }
  func.func @transform_1(%arg0: i32) -> (i32, i32) {
    %c0_i32 = arith.constant 0 : i32
    %c0_i32_0 = arith.constant 0 : i32
    return %c0_i32, %arg0 : i32, i32
  }
  func.func @transform_2(%arg0: i32) -> (i32, i32) {
    %c0_i32 = arith.constant 0 : i32
    %c0_i32_0 = arith.constant 0 : i32
    %c0_i32_1 = arith.constant 0 : i32
    return %c0_i32, %c0_i32_0 : i32, i32
  }
}

</mosaic_0001>

<llo_original>
// kernel: tpu_custom_call.1
$region0: #{tpu_custom_call.1}
  #allocation0 [shape = 'u32[]', space=smem, size = 0x4, offset = 0x4, fixed_abs, tag = 'smem constant byte address 0x4 - core index']
  #allocation1 [shape = 'u32[144,128]{1,0:T(1,128)}', space=vmem, size = 0x12000, scoped, tag = 'internal scratch']
  #allocation2 [shape = 'f32[4,1]{1,0:T(4,128)}', space=vmem, size = 0x800, scoped, tag = 'scratch operand']
  #allocation3 [shape = 'f32[4,1]{1,0:T(4,128)}', space=vmem, size = 0x800, scoped, tag = 'scratch operand']
  #allocation4 [shape = 'f32[4,1]{1,0:T(4,128)}', space=vmem, size = 0x800, scoped, tag = 'scratch operand']
  %s0 = inlined_call_operand.hbm [shape: f32[4,8], index: 0, kind: input, shape index: {}]
  %s1 = inlined_call_operand.hbm [shape: f32[4,8], index: 1, kind: input, shape index: {}]
  %s2 = inlined_call_operand.vmem [shape: f32[4,1], index: 2, kind: output, shape index: {}]
  %s3 = sld [smem:[#allocation0]]
  $region34: #{tpu_custom_call.1} parent=0
    _
  %s5 = ssub.s32 1, %s3
  %s6 = scalar_select 0, %s5, %s3
  $region1: #{tpu_custom_call.1} parent=0
    #allocation5 [shape = 'u8[2048]{0}', space=vmem, size = 0x800, scoped, tag = 'input window, operand 0, single buffered']
    #allocation6 [shape = 's32[1]{0}', space=sflag, size = 0x4, scoped, tag = 'scoped memory for tpu_custom_call.1']
    #allocation7 [shape = 'u8[2048]{0}', space=vmem, size = 0x800, scoped, tag = 'input window, operand 1, single buffered']
    #allocation8 [shape = 's32[1]{0}', space=sflag, size = 0x4, scoped, tag = 'scoped memory for tpu_custom_call.1']
    %7 = vsyncpa [#allocation6], 0
    %8 = vsyncpa [#allocation8], 0
    // Predicated region
    $region2: #{tpu_custom_call.1} parent=1 // pred_check
      _
    $region3: #{tpu_custom_call.1} parent=1 // pred_check_branch
      %10 = sbr.rel (0) target = $region5
    $region4: #{tpu_custom_call.1} parent=1 // pred_region
      %s12 = ssub.s32 64, 64
      %13 = vsyncadd [#allocation6], %s12
      %s15 = sshll.u32 [#allocation5], 4
      %s16 = int_to_ptr.vmem [resolvable:$true] %s15
      %18 = dma.hbm_to_vmem [thread:$0]  %s0, 64, %s16, [#allocation6]
    $region5: #{tpu_custom_call.1} parent=1 // pred_fallthru
      _
    // Predicated region
    $region6: #{tpu_custom_call.1} parent=1 // pred_check
      _
    $region7: #{tpu_custom_call.1} parent=1 // pred_check_branch
      %20 = sbr.rel (0) target = $region9
    $region8: #{tpu_custom_call.1} parent=1 // pred_region
      %s22 = ssub.s32 64, 64
      %23 = vsyncadd [#allocation8], %s22
      %s25 = sshll.u32 [#allocation7], 4
      %s26 = int_to_ptr.vmem [resolvable:$true] %s25
      %28 = dma.hbm_to_vmem [thread:$0]  %s1, 64, %s26, [#allocation8]
    $region9: #{tpu_custom_call.1} parent=1 // pred_fallthru
      _
    // Predicated region
    $region10: #{tpu_custom_call.1} parent=1 // pred_check
      _
    $region11: #{tpu_custom_call.1} parent=1 // pred_check_branch
      %30 = sbr.rel (0) target = $region13
    $region12: #{tpu_custom_call.1} parent=1 // pred_region
      %31 = dma.done [#allocation6], 64
    $region13: #{tpu_custom_call.1} parent=1 // pred_fallthru
      _
    // Predicated region
    $region14: #{tpu_custom_call.1} parent=1 // pred_check
      _
    $region15: #{tpu_custom_call.1} parent=1 // pred_check_branch
      %33 = sbr.rel (0) target = $region17
    $region16: #{tpu_custom_call.1} parent=1 // pred_region
      %34 = dma.done [#allocation8], 64
    $region17: #{tpu_custom_call.1} parent=1 // pred_fallthru
      _
    %p35 = scmp.eq.s32.totalorder 0, 0
    // Predicated region
    $region18: #{tpu_custom_call.1} parent=1 // pred_check
      %p36 = pneg %p35
    $region19: #{tpu_custom_call.1} parent=1 // pred_check_branch
      %38 = sbr.rel (%p36) target = $region21
    $region20: #{tpu_custom_call.1} parent=1 // pred_region
      %vm39 = vcmask 3072
      %40 = vst.msk [vmem:[#allocation2] sm:$0xf] %vm39, 0.0
      %41 = vst.msk [vmem:[#allocation3] sm:$0xf] %vm39, 0.0
      %42 = vst.msk [vmem:[#allocation4] sm:$0xf] %vm39, 0.0
    $region21: #{tpu_custom_call.1} parent=1 // pred_fallthru
      _
    %v43 = vld [vmem:[#allocation5] sm:$0xf]
    %v44 = vld [vmem:[#allocation7] sm:$0xf]
    %v45 = vlaneseq
    %v46 = vshrl.u32 %v45, 7
    %vm47 = vcmask 60416
    %v48 = vsel %vm47, %v43, -inf
    %v49 = vrot.slane %v48, 4
    %v50 = vmax.f32 %v48, %v49
    %v51 = vrot.slane %v50, 2
    %v52 = vmax.f32 %v50, %v51
    %v53 = vrot.slane %v52, 1
    %v54 = vmax.f32 %v52, %v53
    %vm55 = vcmp.eq.f32.partialorder %v43, %v54
    %v56 = vsel %vm55, %v46, 4
    %v57 = vsel %vm47, %v56, 2147483647
    %v58 = vrot.slane %v57, 4
    %vm59 = vcmp.lt.s32.totalorder %v57, %v58
    %v60 = vsel %vm59, %v57, %v58
    %v61 = vrot.slane %v60, 2
    %vm62 = vcmp.lt.s32.totalorder %v60, %v61
    %v63 = vsel %vm62, %v60, %v61
    %v64 = vrot.slane %v63, 1
    %vm65 = vcmp.lt.s32.totalorder %v63, %v64
    %v66 = vsel %vm65, %v63, %v64
    %vm67 = vcmp.eq.s32.totalorder %v46, %v66
    %v68 = vsel %vm67, 1, 0
    %v69 = vcvt.s32.f32 %v68
    %v70 = vsel %vm47, %v44, -inf
    %v71 = vrot.slane %v70, 4
    %v72 = vmax.f32 %v70, %v71
    %v73 = vrot.slane %v72, 2
    %v74 = vmax.f32 %v72, %v73
    %v75 = vrot.slane %v74, 1
    %v76 = vmax.f32 %v74, %v75
    %vm77 = vcmp.eq.f32.partialorder %v44, %v76
    %v78 = vsel %vm77, %v46, 4
    %v79 = vsel %vm47, %v78, 2147483647
    %v80 = vrot.slane %v79, 4
    %vm81 = vcmp.lt.s32.totalorder %v79, %v80
    %v82 = vsel %vm81, %v79, %v80
    %v83 = vrot.slane %v82, 2
    %vm84 = vcmp.lt.s32.totalorder %v82, %v83
    %v85 = vsel %vm84, %v82, %v83
    %v86 = vrot.slane %v85, 1
    %vm87 = vcmp.lt.s32.totalorder %v85, %v86
    %v88 = vsel %vm87, %v85, %v86
    %vm89 = vcmp.eq.s32.totalorder %v46, %v88
    %v90 = vsel %vm89, 1, 0
    %v91 = vcvt.s32.f32 %v90
    %v92 = vld [vmem:[#allocation2] sm:$0xf]
    %v93 = vmul.f32 %v69, %v91
    %v94 = vsel %vm47, %v93, 0.0
    %95 = vadd.xlane.f32.xlu0 %v94
    %v96 = vpop.xlane.xlu0 %95
    %v97 = vadd.f32 %v92, %v96
    %vm98 = vcmask 3072
    %99 = vst.msk [vmem:[#allocation2] sm:$0xf] %vm98, %v97
    %v100 = vld [vmem:[#allocation3] sm:$0xf]
    %v101 = vsel %vm47, %v69, 0.0
    %102 = vadd.xlane.f32.xlu0 %v101
    %v103 = vpop.xlane.xlu0 %102
    %v104 = vadd.f32 %v100, %v103
    %105 = vst.msk [vmem:[#allocation3] sm:$0xf] %vm98, %v104
    %v106 = vld [vmem:[#allocation4] sm:$0xf]
    %v107 = vsel %vm47, %v91, 0.0
    %108 = vadd.xlane.f32.xlu0 %v107
    %v109 = vpop.xlane.xlu0 %108
    %v110 = vadd.f32 %v106, %v109
    %111 = vst.msk [vmem:[#allocation4] sm:$0xf] %vm98, %v110
    // Predicated region
    $region22: #{tpu_custom_call.1} parent=1 // pred_check
      %p112 = pneg %p35
    $region23: #{tpu_custom_call.1} parent=1 // pred_check_branch
      %114 = sbr.rel (%p112) target = $region25
    $region24: #{tpu_custom_call.1} parent=1 // pred_region
      %v115 = vld [vmem:[#allocation2] sm:$0xf]
      %v116 = vld [vmem:[#allocation3] sm:$0xf]
      %v117 = vld [vmem:[#allocation4] sm:$0xf]
      %v118 = vadd.f32 %v116, %v117
      %vm119 = vcmp.gt.f32.partialorder %v118, 0.0
      %v120 = vmul.f32 %v115, 2.0
      %v121 = vmax.f32 %v118, 1.0
      %v122 = vrcp.pop %v121
      %v123 = vmul.f32 %v120, %v122
      %v124 = vsel %vm119, %v123, 0.0
      %125 = vst.msk [vmem:[%s2] sm:$0xf] %vm98, %v124
    $region25: #{tpu_custom_call.1} parent=1 // pred_fallthru
      _
    // Predicated region
    $region26: #{tpu_custom_call.1} parent=1 // pred_check
      _
    $region27: #{tpu_custom_call.1} parent=1 // pred_check_branch
      %127 = sbr.rel (0) target = $region29
    $region28: #{tpu_custom_call.1} parent=1 // pred_region
      _
    $region29: #{tpu_custom_call.1} parent=1 // pred_fallthru
      _
    // Predicated region
    $region30: #{tpu_custom_call.1} parent=1 // pred_check
      _
    $region31: #{tpu_custom_call.1} parent=1 // pred_check_branch
      %129 = sbr.rel (0) target = $region33
    $region32: #{tpu_custom_call.1} parent=1 // pred_region
      _
    $region33: #{tpu_custom_call.1} parent=1 // pred_fallthru
      _
    %130 = vsyncpa [#allocation6], 1
    %131 = vsyncpa [#allocation8], 1

</llo_original>
